<compile_context>
chip_gen: v6e
topology: v6e:2x2x1
jax: 0.10.0
libtpu: 0.0.40
codegen_flags: <defaults>
</compile_context>

<pallas_src>
import functools

import jax
import jax.numpy as jnp
from jax import lax
from jax.experimental import pallas as pl
from jax.experimental.pallas import tpu as pltpu


def _nrmse_reduce_kernel(yp_ref, y_ref, sse_ref, max_ref, min_ref,
                         *, n_total, tile_n, chunk, n_blocks, mask_lanes,
                         unroll):
    """Grid = (row_blocks, spatial_blocks). For each (tbc, tn) input tile,
    accumulate lane-wise partials (sum of squared error, max(y), min(y)) in
    register-carried (tbc, chunk) values, then merge once per grid step into
    the (tbc, chunk) output refs (which act as resident accumulators across
    the innermost "arbitrary" spatial axis)."""
    j = pl.program_id(1)
    rows = sse_ref.shape[0]
    nchunks = tile_n // chunk

    @pl.when(j == 0)
    def _init():
        sse_ref[...] = jnp.zeros((rows, chunk), jnp.float32)
        max_ref[...] = jnp.full((rows, chunk), -jnp.inf, jnp.float32)
        min_ref[...] = jnp.full((rows, chunk), jnp.inf, jnp.float32)

    def _accumulate(masked):
        if masked:
            base = j * tile_n
            # Hoisted out of the chunk loop: built once per (tail) grid step.
            iota = lax.broadcasted_iota(jnp.int32, (rows, chunk), 1)

        def body(k, carry):
            sse_p, max_p, min_p = carry
            idx = k * chunk
            if not isinstance(idx, int):
                idx = pl.multiple_of(idx, chunk)
            yp = yp_ref[:, pl.ds(idx, chunk)].astype(jnp.float32)
            yv = y_ref[:, pl.ds(idx, chunk)].astype(jnp.float32)
            d = yp - yv
            sq = d * d
            if masked:
                valid = (iota + (base + k * chunk)) < n_total
                sq = jnp.where(valid, sq, 0.0)
                mx = jnp.where(valid, yv, -jnp.inf)
                mn = jnp.where(valid, yv, jnp.inf)
            else:
                mx = yv
                mn = yv
            return (sse_p + sq,
                    jnp.maximum(max_p, mx),
                    jnp.minimum(min_p, mn))

        init = (jnp.zeros((rows, chunk), jnp.float32),
                jnp.full((rows, chunk), -jnp.inf, jnp.float32),
                jnp.full((rows, chunk), jnp.inf, jnp.float32))

        if nchunks <= 8:
            sse_p, max_p, min_p = init
            for k in range(nchunks):
                sse_p, max_p, min_p = body(k, (sse_p, max_p, min_p))
        else:
            sse_p, max_p, min_p = lax.fori_loop(
                0, nchunks, body, init, unroll=min(unroll, nchunks))

        # Single read-modify-write of the accumulator refs per grid step.
        sse_ref[...] = sse_ref[...] + sse_p
        max_ref[...] = jnp.maximum(max_ref[...], max_p)
        min_ref[...] = jnp.minimum(min_ref[...], min_p)

    if not mask_lanes:
        _accumulate(False)
    elif n_blocks == 1:
        _accumulate(True)
    else:
        @pl.when(j < n_blocks - 1)
        def _full_blocks():
            _accumulate(False)

        @pl.when(j == n_blocks - 1)
        def _tail_block():
            _accumulate(True)


def _choose_tiles(bc, n, itemsize):
    """Pick (tbc, tn, chunk, mask_lanes).

    tbc <= 64 so three f32 (tbc, 128) register accumulators stay well inside
    the 64-vreg file; >=2 row blocks when bc allows (v7x has 2 TensorCores).
    tn chosen under a cross-generation VMEM budget for the double-buffered
    input tiles (2 inputs x 2 buffers), capped at 8192 lanes.
    """
    if bc % 8 == 0:
        tbc = min(bc, 64)
        if bc // tbc < 2 and bc >= 16:
            tbc = max(8, (bc // 2) // 8 * 8)   # guarantee >= 2 row blocks
    elif bc <= 64:
        tbc = bc        # full-extent row block (always legal)
    else:
        # Row-partial last block: OOB rows read garbage but are row-independent
        # and their output writes are dropped, so this is safe and avoids a
        # host-side pad copy of the inputs.
        tbc = 64

    budget = 24 * 1024 * 1024   # bytes for 2 inputs x 2 pipeline buffers
    max_tn = max(128, (budget // (4 * tbc * itemsize)) // 128 * 128)
    if n < 128:
        tn = n                  # block == full spatial dim (legal)
    else:
        n_ceil = ((n + 127) // 128) * 128
        tn = min(8192, max_tn, n_ceil)
    chunk = min(tn, 128)
    mask_lanes = (n % tn) != 0
    return tbc, tn, chunk, mask_lanes


def _spatial_reductions(yp2d, y2d):
    """yp2d, y2d: [BC, N]. Returns (sse, ymax, ymin), each [BC] float32."""
    bc, n = yp2d.shape
    itemsize = jnp.dtype(y2d.dtype).itemsize
    tbc, tn, chunk, mask_lanes = _choose_tiles(bc, n, itemsize)

    grid = (pl.cdiv(bc, tbc), pl.cdiv(n, tn))
    lane_w = chunk

    kern = functools.partial(
        _nrmse_reduce_kernel,
        n_total=n, tile_n=tn, chunk=chunk, n_blocks=grid[1],
        mask_lanes=mask_lanes, unroll=4)

    out_shapes = (
        jax.ShapeDtypeStruct((bc, lane_w), jnp.float32),  # lane-partial SSE
        jax.ShapeDtypeStruct((bc, lane_w), jnp.float32),  # lane-partial max(y)
        jax.ShapeDtypeStruct((bc, lane_w), jnp.float32),  # lane-partial min(y)
    )
    in_spec = pl.BlockSpec((tbc, tn), lambda i, j: (i, j))
    out_spec = pl.BlockSpec((tbc, lane_w), lambda i, j: (i, 0))

    # VMEM limit from the actual footprint (inputs double-buffered + outputs),
    # with headroom; capped at 48 MiB so it also fits v7x's 64 MiB VMEM.
    in_bytes = 2 * 2 * tbc * tn * itemsize
    out_bytes = 3 * 2 * tbc * lane_w * 4
    vmem_limit = int(min(48 * 1024 * 1024,
                         max(in_bytes + out_bytes + 4 * 1024 * 1024,
                             16 * 1024 * 1024)))

    sse_l, max_l, min_l = pl.pallas_call(
        kern,
        out_shape=out_shapes,
        grid_spec=pltpu.PrefetchScalarGridSpec(
            num_scalar_prefetch=0,
            grid=grid,
            in_specs=[in_spec, in_spec],
            out_specs=[out_spec, out_spec, out_spec],
        ),
        compiler_params=pltpu.CompilerParams(
            dimension_semantics=("parallel", "arbitrary"),
            vmem_limit_bytes=vmem_limit,
        ),
    )(yp2d, y2d)

    # Final 128->1 cross-lane reduce is done in the (tiny) JAX wrapper so the
    # kernel's output stores stay lane-dense (no in-kernel XLU epilogue).
    sse = jnp.sum(sse_l, axis=1)
    ymax = jnp.max(max_l, axis=1)
    ymin = jnp.min(min_l, axis=1)
    return sse, ymax, ymin


def norm_rmse_metric(y_pred, y, reduction="mean", normalization="min-max"):
    """JAX/Pallas equivalent of NormRMSEMetric.forward (reduction='mean',
    normalization='min-max'). y_pred, y: [B, C, *spatial]. Returns scalar."""
    assert normalization.lower() == "min-max"
    assert reduction == "mean"
    b, c = y.shape[0], y.shape[1]
    n = 1
    for s in y.shape[2:]:
        n *= s

    # Reshape only (no dtype change): bf16 inputs stay bf16 into the kernel.
    yp2d = jnp.reshape(y_pred, (b * c, n))
    y2d = jnp.reshape(y, (b * c, n))

    sse, ymax, ymin = _spatial_reductions(yp2d, y2d)

    rmse = jnp.sqrt(sse / jnp.float32(n))              # [B*C]
    minmax = ymax - ymin                               # [B*C]
    # NOTE: if max(y) == min(y) for a (b,c) slice, nrmse is inf (not NaN),
    # matching the PyTorch module (monai's reduction only filters NaN).
    nrmse = jnp.reshape(rmse / minmax, (b, c))         # [B, C]

    # monai.metrics.utils.do_metric_reduction(nrmse, "mean"):
    # nan-aware mean over channels, then over batch (tiny; plain-JAX glue).
    nans = jnp.isnan(nrmse)
    not_nans = (~nans).astype(jnp.float32)
    f = jnp.where(nans, 0.0, nrmse)

    not_nans_c = not_nans.sum(axis=1)                                   # [B]
    f_c = jnp.where(not_nans_c > 0,
                    f.sum(axis=1) / jnp.maximum(not_nans_c, 1.0), 0.0)
    not_nans_b = (not_nans_c > 0).astype(jnp.float32).sum(axis=0)       # scalar
    out = jnp.where(not_nans_b > 0,
                    f_c.sum(axis=0) / jnp.maximum(not_nans_b, 1.0), 0.0)
    return out


def _reference(y_pred, y):
    b, c = y.shape[0], y.shape[1]
    sq = (y_pred.astype(jnp.float32) - y.astype(jnp.float32)) ** 2
    rmse = jnp.sqrt(jnp.mean(sq.reshape(b, c, -1), axis=-1))
    yf = y.astype(jnp.float32).reshape(b, c, -1)
    mm = jnp.max(yf, axis=-1) - jnp.min(yf, axis=-1)
    return jnp.mean(jnp.mean(rmse / mm, axis=1), axis=0)


if __name__ == "__main__":
    key = jax.random.PRNGKey(0)
    k1, k2, k3, k4, k5, k6 = jax.random.split(key, 6)

    # Case 1: spatial size is a multiple of 128 (no masking path).
    B, C, H, W = 2, 4, 16, 16
    y_pred = jax.random.normal(k1, (B, C, H, W), dtype=jnp.float32)
    y = jax.random.normal(k2, (B, C, H, W), dtype=jnp.float32)
    result = jax.block_until_ready(jax.jit(norm_rmse_metric)(y_pred, y))
    ref = _reference(y_pred, y)
    assert jnp.allclose(result, ref, rtol=1e-4, atol=1e-5), (result, ref)

    # Case 2: ragged spatial extent + BC not a multiple of 8 (masked path,
    # full-extent row block).
    B2, C2, H2, W2 = 1, 3, 13, 11
    y_pred2 = jax.random.normal(k3, (B2, C2, H2, W2), dtype=jnp.float32)
    y2 = jax.random.normal(k4, (B2, C2, H2, W2), dtype=jnp.float32)
    result2 = jax.block_until_ready(jax.jit(norm_rmse_metric)(y_pred2, y2))
    ref2 = _reference(y_pred2, y2)
    assert jnp.allclose(result2, ref2, rtol=1e-4, atol=1e-5), (result2, ref2)

    # Case 3: spatial > tile (multiple spatial blocks, masked tail,
    # fori_loop chunk path).
    B3, C3, H3, W3 = 2, 4, 96, 96
    y_pred3 = jax.random.normal(k5, (B3, C3, H3, W3), dtype=jnp.float32)
    y3 = jax.random.normal(k6, (B3, C3, H3, W3), dtype=jnp.float32)
    result3 = jax.block_until_ready(jax.jit(norm_rmse_metric)(y_pred3, y3))
    ref3 = _reference(y_pred3, y3)
    assert jnp.allclose(result3, ref3, rtol=1e-4, atol=1e-5), (result3, ref3)

    print("KERNEL_OK")
</pallas_src>

<mosaic_0001>
module attributes {stable_mosaic.version = 11 : i64} {
  func.func @_nrmse_reduce_kernel(%arg0: i32, %arg1: i32, %arg2: memref<8x256xf32, #tpu.memory_space<vmem>>, %arg3: memref<8x256xf32, #tpu.memory_space<vmem>>, %arg4: memref<8x128xf32, #tpu.memory_space<vmem>>, %arg5: memref<8x128xf32, #tpu.memory_space<vmem>>, %arg6: memref<8x128xf32, #tpu.memory_space<vmem>>) attributes {dimension_semantics = [#tpu.dimension_semantics<parallel>, #tpu.dimension_semantics<arbitrary>], iteration_bounds = array<i64: 1, 1>, scalar_prefetch = 0 : i64, scratch_operands = 0 : i64, tpu.core_type = #tpu.core_type<tc>, window_params = [{transform_indices = @transform_0, window_bounds = array<i64: 8, 256>}, {transform_indices = @transform_1, window_bounds = array<i64: 8, 256>}, {transform_indices = @transform_2, window_bounds = array<i64: 8, 128>}, {transform_indices = @transform_3, window_bounds = array<i64: 8, 128>}, {transform_indices = @transform_4, window_bounds = array<i64: 8, 128>}]} {
    %c0_i32 = arith.constant 0 : i32
    %0 = arith.cmpi eq, %arg1, %c0_i32 : i32
    %1 = arith.extui %0 : i1 to i32
    %c0_i32_0 = arith.constant 0 : i32
    %2 = arith.cmpi ne, %1, %c0_i32_0 : i32
    scf.if %2 {
      %cst_21 = arith.constant 0.000000e+00 : f32
      %29 = vector.broadcast %cst_21 : f32 to vector<8x128xf32>
      %c0_22 = arith.constant 0 : index
      %c0_23 = arith.constant 0 : index
      %30 = vector.load %arg4[%c0_22, %c0_23] : memref<8x128xf32, #tpu.memory_space<vmem>>, vector<8x128xf32>
      tpu.vector_store %arg4[%c0_22, %c0_23], %29 {strides = array<i32>} : memref<8x128xf32, #tpu.memory_space<vmem>>, vector<8x128xf32>,
      %cst_24 = arith.constant 0xFF800000 : f32
      %31 = vector.broadcast %cst_24 : f32 to vector<8x128xf32>
      %c0_25 = arith.constant 0 : index
      %c0_26 = arith.constant 0 : index
      %32 = vector.load %arg5[%c0_25, %c0_26] : memref<8x128xf32, #tpu.memory_space<vmem>>, vector<8x128xf32>
      tpu.vector_store %arg5[%c0_25, %c0_26], %31 {strides = array<i32>} : memref<8x128xf32, #tpu.memory_space<vmem>>, vector<8x128xf32>,
      %cst_27 = arith.constant 0x7F800000 : f32
      %33 = vector.broadcast %cst_27 : f32 to vector<8x128xf32>
      %c0_28 = arith.constant 0 : index
      %c0_29 = arith.constant 0 : index
      %34 = vector.load %arg6[%c0_28, %c0_29] : memref<8x128xf32, #tpu.memory_space<vmem>>, vector<8x128xf32>
      tpu.vector_store %arg6[%c0_28, %c0_29], %33 {strides = array<i32>} : memref<8x128xf32, #tpu.memory_space<vmem>>, vector<8x128xf32>,
    } else {
    }
    %cst = arith.constant 0.000000e+00 : f32
    %3 = vector.broadcast %cst : f32 to vector<8x128xf32>
    %cst_1 = arith.constant 0xFF800000 : f32
    %4 = vector.broadcast %cst_1 : f32 to vector<8x128xf32>
    %cst_2 = arith.constant 0x7F800000 : f32
    %5 = vector.broadcast %cst_2 : f32 to vector<8x128xf32>
    %c0 = arith.constant 0 : index
    %c0_3 = arith.constant 0 : index
    %6 = vector.load %arg2[%c0, %c0_3] : memref<8x256xf32, #tpu.memory_space<vmem>>, vector<8x128xf32>
    %c0_4 = arith.constant 0 : index
    %c0_5 = arith.constant 0 : index
    %7 = vector.load %arg3[%c0_4, %c0_5] : memref<8x256xf32, #tpu.memory_space<vmem>>, vector<8x128xf32>
    %8 = arith.subf %6, %7 : vector<8x128xf32>
    %9 = arith.mulf %8, %8 : vector<8x128xf32>
    %10 = arith.addf %3, %9 : vector<8x128xf32>
    %11 = arith.maximumf %4, %7 : vector<8x128xf32>
    %12 = arith.minimumf %5, %7 : vector<8x128xf32>
    %c0_6 = arith.constant 0 : index
    %c128 = arith.constant 128 : index
    %13 = vector.load %arg2[%c0_6, %c128] : memref<8x256xf32, #tpu.memory_space<vmem>>, vector<8x128xf32>
    %c0_7 = arith.constant 0 : index
    %c128_8 = arith.constant 128 : index
    %14 = vector.load %arg3[%c0_7, %c128_8] : memref<8x256xf32, #tpu.memory_space<vmem>>, vector<8x128xf32>
    %15 = arith.subf %13, %14 : vector<8x128xf32>
    %16 = arith.mulf %15, %15 : vector<8x128xf32>
    %17 = arith.addf %10, %16 : vector<8x128xf32>
    %18 = arith.maximumf %11, %14 : vector<8x128xf32>
    %19 = arith.minimumf %12, %14 : vector<8x128xf32>
    %c0_9 = arith.constant 0 : index
    %c0_10 = arith.constant 0 : index
    %20 = vector.load %arg4[%c0_9, %c0_10] : memref<8x128xf32, #tpu.memory_space<vmem>>, vector<8x128xf32>
    %21 = arith.addf %20, %17 : vector<8x128xf32>
    %c0_11 = arith.constant 0 : index
    %c0_12 = arith.constant 0 : index
    %22 = vector.load %arg4[%c0_11, %c0_12] : memref<8x128xf32, #tpu.memory_space<vmem>>, vector<8x128xf32>
    tpu.vector_store %arg4[%c0_11, %c0_12], %21 {strides = array<i32>} : memref<8x128xf32, #tpu.memory_space<vmem>>, vector<8x128xf32>,
    %c0_13 = arith.constant 0 : index
    %c0_14 = arith.constant 0 : index
    %23 = vector.load %arg5[%c0_13, %c0_14] : memref<8x128xf32, #tpu.memory_space<vmem>>, vector<8x128xf32>
    %24 = arith.maximumf %23, %18 : vector<8x128xf32>
    %c0_15 = arith.constant 0 : index
    %c0_16 = arith.constant 0 : index
    %25 = vector.load %arg5[%c0_15, %c0_16] : memref<8x128xf32, #tpu.memory_space<vmem>>, vector<8x128xf32>
    tpu.vector_store %arg5[%c0_15, %c0_16], %24 {strides = array<i32>} : memref<8x128xf32, #tpu.memory_space<vmem>>, vector<8x128xf32>,
    %c0_17 = arith.constant 0 : index
    %c0_18 = arith.constant 0 : index
    %26 = vector.load %arg6[%c0_17, %c0_18] : memref<8x128xf32, #tpu.memory_space<vmem>>, vector<8x128xf32>
    %27 = arith.minimumf %26, %19 : vector<8x128xf32>
    %c0_19 = arith.constant 0 : index
    %c0_20 = arith.constant 0 : index
    %28 = vector.load %arg6[%c0_19, %c0_20] : memref<8x128xf32, #tpu.memory_space<vmem>>, vector<8x128xf32>
    tpu.vector_store %arg6[%c0_19, %c0_20], %27 {strides = array<i32>} : memref<8x128xf32, #tpu.memory_space<vmem>>, vector<8x128xf32>,
    return
  }
  func.func @transform_0(%arg0: i32, %arg1: i32) -> (i32, i32) {
    %c0_i32 = arith.constant 0 : i32
    return %arg0, %arg1 : i32, i32
  }
  func.func @transform_1(%arg0: i32, %arg1: i32) -> (i32, i32) {
    %c0_i32 = arith.constant 0 : i32
    return %arg0, %arg1 : i32, i32
  }
  func.func @transform_2(%arg0: i32, %arg1: i32) -> (i32, i32) {
    %c0_i32 = arith.constant 0 : i32
    %c0_i32_0 = arith.constant 0 : i32
    return %arg0, %c0_i32 : i32, i32
  }
  func.func @transform_3(%arg0: i32, %arg1: i32) -> (i32, i32) {
    %c0_i32 = arith.constant 0 : i32
    %c0_i32_0 = arith.constant 0 : i32
    return %arg0, %c0_i32 : i32, i32
  }
  func.func @transform_4(%arg0: i32, %arg1: i32) -> (i32, i32) {
    %c0_i32 = arith.constant 0 : i32
    %c0_i32_0 = arith.constant 0 : i32
    return %arg0, %c0_i32 : i32, i32
  }
}

</mosaic_0001>

<llo_original>
// kernel: norm_rmse_metric.1
$region0: #{norm_rmse_metric.1}
  #allocation0 [shape = 'u32[]', space=smem, size = 0x4, offset = 0x4, fixed_abs, tag = 'smem constant byte address 0x4 - core index']
  #allocation1 [shape = 'u32[144,128]{1,0:T(1,128)}', space=vmem, size = 0x12000, scoped, tag = 'internal scratch']
  %s0 = inlined_call_operand.vmem [shape: f32[8,256], index: 0, kind: input, shape index: {}]
  %s1 = inlined_call_operand.vmem [shape: f32[8,256], index: 1, kind: input, shape index: {}]
  %s2 = inlined_call_operand.vmem [shape: f32[8,128], index: 2, kind: output, shape index: {0}]
  %s3 = inlined_call_operand.vmem [shape: f32[8,128], index: 3, kind: output, shape index: {1}]
  %s4 = inlined_call_operand.vmem [shape: f32[8,128], index: 4, kind: output, shape index: {2}]
  %5 = xla_tuple %s2, %s3, %s4
  %s6 = sld [smem:[#allocation0]]
  $region38: #{norm_rmse_metric.1} parent=0
    _
  %s8 = ssub.s32 1, %s6
  %s9 = scalar_select 0, %s8, %s6
  // Predicated region
  $region2: #{norm_rmse_metric.1} parent=0 // pred_check
    _
  $region3: #{norm_rmse_metric.1} parent=0 // pred_check_branch
    %11 = sbr.rel (0) target = $region5
  $region4: #{norm_rmse_metric.1} parent=0 // pred_region
    _
  $region5: #{norm_rmse_metric.1} parent=0 // pred_fallthru
    _
  // Predicated region
  $region6: #{norm_rmse_metric.1} parent=0 // pred_check
    _
  $region7: #{norm_rmse_metric.1} parent=0 // pred_check_branch
    %13 = sbr.rel (0) target = $region9
  $region8: #{norm_rmse_metric.1} parent=0 // pred_region
    _
  $region9: #{norm_rmse_metric.1} parent=0 // pred_fallthru
    _
  %p14 = scmp.eq.s32.totalorder 0, 0
  // Predicated region
  $region10: #{norm_rmse_metric.1} parent=0 // pred_check
    %p15 = pneg %p14
  $region11: #{norm_rmse_metric.1} parent=0 // pred_check_branch
    %17 = sbr.rel (%p15) target = $region13
  $region12: #{norm_rmse_metric.1} parent=0 // pred_region
    %18 = vst [vmem:[%s2] sm:$0xff] 0.0
    %19 = vst [vmem:[%s3] sm:$0xff] -inf
    %20 = vst [vmem:[%s4] sm:$0xff] inf
  $region13: #{norm_rmse_metric.1} parent=0 // pred_fallthru
    _
  %v21 = vld [vmem:[%s0] sm:$0xff]
  %v22 = vld [vmem:[%s1] sm:$0xff]
  %v23 = vsub.f32 %v21, %v22
  %v24 = vmul.f32 %v23, %v23
  %v25 = vadd.f32 %v24, 0.0
  %v26 = vld [vmem:[%s0 + $0x8] sm:$0xff]
  %v27 = vld [vmem:[%s1 + $0x8] sm:$0xff]
  %v28 = vsub.f32 %v26, %v27
  %v29 = vmul.f32 %v28, %v28
  %v30 = vadd.f32 %v25, %v29
  %v31 = vmax.f32 %v22, %v27
  %v32 = vmin.f32 %v22, %v27
  %v33 = vld [vmem:[%s2] sm:$0xff]
  %v34 = vadd.f32 %v33, %v30
  %35 = vst [vmem:[%s2] sm:$0xff] %v34
  %v36 = vld [vmem:[%s3] sm:$0xff]
  %v37 = vmax.f32 %v36, %v31
  %38 = vst [vmem:[%s3] sm:$0xff] %v37
  %v39 = vld [vmem:[%s4] sm:$0xff]
  %v40 = vmin.f32 %v39, %v32
  %41 = vst [vmem:[%s4] sm:$0xff] %v40
  // Predicated region
  $region14: #{norm_rmse_metric.1} parent=0 // pred_check
    _
  $region15: #{norm_rmse_metric.1} parent=0 // pred_check_branch
    %43 = sbr.rel (0) target = $region17
  $region16: #{norm_rmse_metric.1} parent=0 // pred_region
    _
  $region17: #{norm_rmse_metric.1} parent=0 // pred_fallthru
    _
  // Predicated region
  $region18: #{norm_rmse_metric.1} parent=0 // pred_check
    _
  $region19: #{norm_rmse_metric.1} parent=0 // pred_check_branch
    %45 = sbr.rel (0) target = $region21
  $region20: #{norm_rmse_metric.1} parent=0 // pred_region
    _
  $region21: #{norm_rmse_metric.1} parent=0 // pred_fallthru
    _
  // Predicated region
  $region22: #{norm_rmse_metric.1} parent=0 // pred_check
    _
  $region23: #{norm_rmse_metric.1} parent=0 // pred_check_branch
    %47 = sbr.rel (0) target = $region25
  $region24: #{norm_rmse_metric.1} parent=0 // pred_region
    _
  $region25: #{norm_rmse_metric.1} parent=0 // pred_fallthru
    _
  // Predicated region
  $region26: #{norm_rmse_metric.1} parent=0 // pred_check
    _
  $region27: #{norm_rmse_metric.1} parent=0 // pred_check_branch
    %49 = sbr.rel (0) target = $region29
  $region28: #{norm_rmse_metric.1} parent=0 // pred_region
    _
  $region29: #{norm_rmse_metric.1} parent=0 // pred_fallthru
    _
  // Predicated region
  $region30: #{norm_rmse_metric.1} parent=0 // pred_check
    _
  $region31: #{norm_rmse_metric.1} parent=0 // pred_check_branch
    %51 = sbr.rel (0) target = $region33
  $region32: #{norm_rmse_metric.1} parent=0 // pred_region
    _
  $region33: #{norm_rmse_metric.1} parent=0 // pred_fallthru
    _
  // Predicated region
  $region34: #{norm_rmse_metric.1} parent=0 // pred_check
    _
  $region35: #{norm_rmse_metric.1} parent=0 // pred_check_branch
    %53 = sbr.rel (0) target = $region37
  $region36: #{norm_rmse_metric.1} parent=0 // pred_region
    _
  $region37: #{norm_rmse_metric.1} parent=0 // pred_fallthru
    _

</llo_original>
